<compile_context>
chip_gen: v7x
topology: tpu7x:2x2x1
jax: 0.10.0
libtpu: 0.0.40
codegen_flags: <defaults>
</compile_context>

<pallas_src>
import functools

import jax
import jax.numpy as jnp
from jax.experimental import pallas as pl
from jax.experimental.pallas import tpu as pltpu

BN_EPS = 1e-5
_LANE = 128

_VMEM_CAP_CACHE = None


def _vmem_capacity_bytes():
    """Per-core VMEM capacity (trace-time query, cached, with fallback)."""
    global _VMEM_CAP_CACHE
    if _VMEM_CAP_CACHE is None:
        cap = 0
        try:
            cap = int(pltpu.get_tpu_info().vmem_capacity_bytes)
        except Exception:
            cap = 0
        if cap <= 0 or cap > (256 << 20):
            cap = 64 << 20  # conservative (v7x-sized) fallback
        _VMEM_CAP_CACHE = cap
    return _VMEM_CAP_CACHE


def _largest_divisor_leq(n, k):
    k = max(1, min(n, k))
    for d in range(k, 0, -1):
        if n % d == 0:
            return d
    return 1


def _round_up(x, m):
    return -(-x // m) * m


# --------------------------- kernels ---------------------------------------

def _stats_kernel(x_ref, sum_ref, ssq_ref, *, hw, tile, ragged):
    """Accumulate per-channel sum and sum(x^2) over the lane-tile grid axis."""
    @pl.when(pl.program_id(1) == 0)
    def _():
        sum_ref[...] = jnp.zeros_like(sum_ref)
        ssq_ref[...] = jnp.zeros_like(ssq_ref)

    x = x_ref[...].astype(jnp.float32)                        # (Nb, C, T)
    if ragged:
        # Last lane-tile reads unspecified data past hw -> mask before summing.
        lane = jax.lax.broadcasted_iota(jnp.int32, x.shape, 2)
        x = jnp.where(lane + pl.program_id(1) * tile < hw, x, 0.0)
    s = jnp.sum(x, axis=2, keepdims=True)                     # (Nb, C, 1)
    q = jnp.sum(x * x, axis=2, keepdims=True)
    sum_ref[...] += jnp.sum(s, axis=0, keepdims=True)         # (1, C, 1)
    ssq_ref[...] += jnp.sum(q, axis=0, keepdims=True)


def _apply_kernel(x_ref, a_ref, b_ref, o_ref):
    """out = sigmoid(x * a + b) * x with per-channel a, b.

    No masking needed: OOB lanes of a ragged last block are read as garbage
    but their stores are clipped by Pallas.
    """
    x = x_ref[...].astype(jnp.float32)                        # (Nb, C, T)
    y = jax.nn.sigmoid(x * a_ref[...] + b_ref[...]) * x
    o_ref[...] = y.astype(o_ref.dtype)


def _fused_kernel(x_ref, g_ref, bt_ref, o_ref, *, cnt):
    """Single-kernel path: whole activation resident in VMEM (2 HBM passes)."""
    x = x_ref[...].astype(jnp.float32)                        # (N, C, hw)
    s = jnp.sum(jnp.sum(x, axis=2, keepdims=True), axis=0)    # (C, 1)
    q = jnp.sum(jnp.sum(x * x, axis=2, keepdims=True), axis=0)
    mean = s * (1.0 / cnt)
    var = jnp.maximum(q * (1.0 / cnt) - mean * mean, 0.0)
    inv = jax.lax.rsqrt(var + BN_EPS)
    g = g_ref[...]                                            # (C, 1)
    w = jnp.abs(g) / jnp.sum(jnp.abs(g), keepdims=True)
    a = g * w * inv
    b = bt_ref[...] * w - a * mean
    o_ref[...] = (jax.nn.sigmoid(x * a + b) * x).astype(o_ref.dtype)


# --------------------------- wrapper ----------------------------------------

@functools.partial(jax.jit, static_argnames=("force_two_pass", "max_block_bytes"))
def channel_att(x_nchw, gamma, beta, *, force_two_pass=False, max_block_bytes=None):
    """x_nchw: (N, C, H, W); gamma/beta: (C,) BatchNorm2d affine params."""
    N, C, H, W = x_nchw.shape
    hw = H * W
    itemsize = x_nchw.dtype.itemsize

    x3 = x_nchw.reshape(N, C, hw)                 # free, contiguous reshape
    g2 = gamma.astype(jnp.float32).reshape(C, 1)
    bt2 = beta.astype(jnp.float32).reshape(C, 1)

    cap = _vmem_capacity_bytes()
    usable = max(32 << 20, cap - (16 << 20))

    # ---- fused single-kernel path for small activations ---------------------
    total_elems = N * C * hw
    fused_need = 4 * total_elems * itemsize + 4 * total_elems * 4 + (2 << 20)
    if (not force_two_pass) and fused_need <= usable:
        out3 = pl.pallas_call(
            functools.partial(_fused_kernel, cnt=float(N * hw)),
            out_shape=jax.ShapeDtypeStruct((N, C, hw), x_nchw.dtype),
            grid=(1,),
            in_specs=[pl.BlockSpec((N, C, hw), lambda i: (0, 0, 0)),
                      pl.BlockSpec((C, 1), lambda i: (0, 0)),
                      pl.BlockSpec((C, 1), lambda i: (0, 0))],
            out_specs=pl.BlockSpec((N, C, hw), lambda i: (0, 0, 0)),
            compiler_params=pltpu.CompilerParams(
                dimension_semantics=("arbitrary",),
                vmem_limit_bytes=int(min(usable, max(48 << 20, fused_need)))),
        )(x3, g2, bt2)
        return out3.reshape(N, C, H, W)

    # ---- two-pass path: block sizing from a VMEM byte budget ----------------
    block_budget = min(8 << 20, cap // 16)        # ~4 MiB v7x, ~8 MiB v5e/v6e
    if max_block_bytes is not None:
        block_budget = min(block_budget, int(max_block_bytes))
    block_budget = max(block_budget, _LANE * C * itemsize)

    per_image = C * hw * itemsize
    if per_image <= block_budget:
        # Whole spatial extent per block; pack several batch images per step
        # (avoids tiny overhead-dominated blocks for late-CNN 7x7/14x14 maps).
        nb = _largest_divisor_leq(N, block_budget // per_image)
        tile, n_tiles, nblk = hw, 1, N // nb
        ragged = False
    else:
        # Lane-dense tiling of H*W; ragged last tile handled in-kernel.
        nb, nblk = 1, N
        tile = max(_LANE, (block_budget // (C * itemsize)) // _LANE * _LANE)
        tile = min(tile, _round_up(hw, _LANE))
        n_tiles = -(-hw // tile)
        ragged = (n_tiles * tile) != hw

    block_elems = nb * C * tile
    blk_in = block_elems * itemsize
    blk_f32 = block_elems * 4
    stats_vmem = int(min(usable, max(32 << 20, 2 * blk_in + 3 * blk_f32 + (4 << 20))))
    apply_vmem = int(min(usable, max(32 << 20, 4 * blk_in + 3 * blk_f32 + (4 << 20))))

    # ---- pass 1: per-channel partial sums / sums-of-squares ------------------
    part_s, part_q = pl.pallas_call(
        functools.partial(_stats_kernel, hw=hw, tile=tile, ragged=ragged),
        out_shape=(jax.ShapeDtypeStruct((nblk, C, 1), jnp.float32),
                   jax.ShapeDtypeStruct((nblk, C, 1), jnp.float32)),
        grid=(nblk, n_tiles),
        in_specs=[pl.BlockSpec((nb, C, tile), lambda i, t: (i, 0, t))],
        out_specs=(pl.BlockSpec((1, C, 1), lambda i, t: (i, 0, 0)),
                   pl.BlockSpec((1, C, 1), lambda i, t: (i, 0, 0))),
        compiler_params=pltpu.CompilerParams(
            dimension_semantics=("parallel", "arbitrary"),
            vmem_limit_bytes=stats_vmem),
    )(x3)

    # ---- O(C) glue: fold BN + channel weights into per-channel a, b ---------
    cnt = jnp.float32(N * hw)
    s = jnp.sum(part_s, axis=0)                   # (C, 1)
    q = jnp.sum(part_q, axis=0)
    mean = s / cnt
    var = jnp.maximum(q / cnt - mean * mean, 0.0)  # biased var, clamp >= 0
    inv = jax.lax.rsqrt(var + BN_EPS)
    w = jnp.abs(g2) / jnp.sum(jnp.abs(g2))        # |gamma| / sum|gamma|
    a = g2 * w * inv                              # (C, 1)
    b = bt2 * w - a * mean                        # (C, 1)

    # ---- pass 2: apply gate, one block at a time -----------------------------
    out3 = pl.pallas_call(
        _apply_kernel,
        out_shape=jax.ShapeDtypeStruct((N, C, hw), x_nchw.dtype),
        grid=(nblk, n_tiles),
        in_specs=[pl.BlockSpec((nb, C, tile), lambda i, t: (i, 0, t)),
                  pl.BlockSpec((C, 1), lambda i, t: (0, 0)),
                  pl.BlockSpec((C, 1), lambda i, t: (0, 0))],
        out_specs=pl.BlockSpec((nb, C, tile), lambda i, t: (i, 0, t)),
        compiler_params=pltpu.CompilerParams(
            dimension_semantics=("parallel", "parallel"),
            vmem_limit_bytes=apply_vmem),
    )(x3, a, b)

    return out3.reshape(N, C, H, W)


# --------------------------- reference & test --------------------------------

def channel_att_ref(x_nchw, gamma, beta):
    """Pure-JAX reference mirroring the PyTorch forward."""
    mean = jnp.mean(x_nchw, axis=(0, 2, 3), keepdims=True)
    var = jnp.mean((x_nchw - mean) ** 2, axis=(0, 2, 3), keepdims=True)
    x_hat = (x_nchw - mean) / jnp.sqrt(var + BN_EPS)
    bn = x_hat * gamma[None, :, None, None] + beta[None, :, None, None]
    w = jnp.abs(gamma) / jnp.sum(jnp.abs(gamma))
    return jax.nn.sigmoid(bn * w[None, :, None, None]) * x_nchw


if __name__ == "__main__":
    key = jax.random.PRNGKey(0)
    kx, kg, kb, kx2 = jax.random.split(key, 4)

    N, C, H, W = 2, 4, 16, 16
    x = jax.random.normal(kx, (N, C, H, W), dtype=jnp.float32)
    gamma = 1.0 + 0.5 * jax.random.normal(kg, (C,), dtype=jnp.float32)
    beta = 0.1 * jax.random.normal(kb, (C,), dtype=jnp.float32)
    ref = channel_att_ref(x, gamma, beta)

    # Fused single-kernel path (whole activation VMEM-resident).
    out = jax.block_until_ready(channel_att(x, gamma, beta))
    assert out.shape == (N, C, H, W)
    assert jnp.allclose(out, ref, atol=2e-5, rtol=2e-5), "fused path mismatch"

    # Two-pass path, batch-blocked (several images per block, tile == H*W).
    out2 = jax.block_until_ready(channel_att(x, gamma, beta, force_two_pass=True))
    assert jnp.allclose(out2, ref, atol=2e-5, rtol=2e-5), "two-pass path mismatch"

    # Two-pass path with ragged lane tiling (hw=144 not a multiple of 128):
    # exercises masked stats and clipped apply stores (no pad / slice copies).
    xr = jax.random.normal(kx2, (2, C, 12, 12), dtype=jnp.float32)
    ref_r = channel_att_ref(xr, gamma, beta)
    out3 = jax.block_until_ready(
        channel_att(xr, gamma, beta, force_two_pass=True, max_block_bytes=2048))
    assert jnp.allclose(out3, ref_r, atol=2e-5, rtol=2e-5), "ragged path mismatch"

    print("KERNEL_OK")
</pallas_src>

<mosaic_0001>
module attributes {stable_mosaic.version = 11 : i64} {
  func.func @_fused_kernel(%arg0: i32, %arg1: memref<2x4x256xf32, #tpu.memory_space<vmem>>, %arg2: memref<4x1xf32, #tpu.memory_space<vmem>>, %arg3: memref<4x1xf32, #tpu.memory_space<vmem>>, %arg4: memref<2x4x256xf32, #tpu.memory_space<vmem>>) attributes {dimension_semantics = [#tpu.dimension_semantics<arbitrary>], iteration_bounds = array<i64: 1>, scalar_prefetch = 0 : i64, scratch_operands = 0 : i64, tpu.core_type = #tpu.core_type<tc>, window_params = [{pipeline_mode = #tpu.pipeline_mode<synchronous>, transform_indices = @transform_0, window_bounds = array<i64: 2, 4, 256>}, {pipeline_mode = #tpu.pipeline_mode<synchronous>, transform_indices = @transform_1, window_bounds = array<i64: 4, 1>}, {pipeline_mode = #tpu.pipeline_mode<synchronous>, transform_indices = @transform_2, window_bounds = array<i64: 4, 1>}, {pipeline_mode = #tpu.pipeline_mode<synchronous>, transform_indices = @transform_3, window_bounds = array<i64: 2, 4, 256>}]} {
    %c0 = arith.constant 0 : index
    %c0_0 = arith.constant 0 : index
    %c0_1 = arith.constant 0 : index
    %0 = vector.load %arg1[%c0, %c0_0, %c0_1] : memref<2x4x256xf32, #tpu.memory_space<vmem>>, vector<2x4x256xf32>
    %cst = arith.constant dense<0.000000e+00> : vector<2x4xf32>
    %1 = vector.multi_reduction <add>, %0, %cst [2] : vector<2x4x256xf32> to vector<2x4xf32>
    %2 = vector.shape_cast %1 : vector<2x4xf32> to vector<2x4x1xf32>
    %cst_2 = arith.constant dense<0.000000e+00> : vector<4x1xf32>
    %3 = vector.multi_reduction <add>, %2, %cst_2 [0] : vector<2x4x1xf32> to vector<4x1xf32>
    %4 = arith.mulf %0, %0 : vector<2x4x256xf32>
    %cst_3 = arith.constant dense<0.000000e+00> : vector<2x4xf32>
    %5 = vector.multi_reduction <add>, %4, %cst_3 [2] : vector<2x4x256xf32> to vector<2x4xf32>
    %6 = vector.shape_cast %5 : vector<2x4xf32> to vector<2x4x1xf32>
    %cst_4 = arith.constant dense<0.000000e+00> : vector<4x1xf32>
    %7 = vector.multi_reduction <add>, %6, %cst_4 [0] : vector<2x4x1xf32> to vector<4x1xf32>
    %cst_5 = arith.constant 0.001953125 : f32
    %8 = vector.broadcast %cst_5 : f32 to vector<4x1xf32>
    %9 = arith.mulf %3, %8 : vector<4x1xf32>
    %cst_6 = arith.constant 0.001953125 : f32
    %10 = vector.broadcast %cst_6 : f32 to vector<4x1xf32>
    %11 = arith.mulf %7, %10 : vector<4x1xf32>
    %12 = arith.mulf %9, %9 : vector<4x1xf32>
    %13 = arith.subf %11, %12 : vector<4x1xf32>
    %cst_7 = arith.constant 0.000000e+00 : f32
    %14 = vector.broadcast %cst_7 : f32 to vector<4x1xf32>
    %15 = arith.maximumf %13, %14 : vector<4x1xf32>
    %cst_8 = arith.constant 9.99999974E-6 : f32
    %16 = vector.broadcast %cst_8 : f32 to vector<4x1xf32>
    %17 = arith.addf %15, %16 : vector<4x1xf32>
    %18 = math.rsqrt %17 : vector<4x1xf32>
    %c0_9 = arith.constant 0 : index
    %c0_10 = arith.constant 0 : index
    %19 = vector.load %arg2[%c0_9, %c0_10] : memref<4x1xf32, #tpu.memory_space<vmem>>, vector<4x1xf32>
    %20 = math.absf %19 : vector<4x1xf32>
    %21 = math.absf %19 : vector<4x1xf32>
    %22 = vector.shape_cast %21 : vector<4x1xf32> to vector<1x4x1xf32>
    %cst_11 = arith.constant dense<0.000000e+00> : vector<1xf32>
    %23 = vector.multi_reduction <add>, %22, %cst_11 [1, 2] : vector<1x4x1xf32> to vector<1xf32>
    %24 = vector.shape_cast %23 : vector<1xf32> to vector<1x1x1xf32>
    %25 = vector.extract %24[0, 0, 0] : f32 from vector<1x1x1xf32>
    %26 = vector.broadcast %25 : f32 to vector<1x1xf32>
    %27 = vector.broadcast %26 : vector<1x1xf32> to vector<4x1xf32>
    %28 = arith.divf %20, %27 : vector<4x1xf32>
    %29 = arith.mulf %19, %28 : vector<4x1xf32>
    %30 = arith.mulf %29, %18 : vector<4x1xf32>
    %c0_12 = arith.constant 0 : index
    %c0_13 = arith.constant 0 : index
    %31 = vector.load %arg3[%c0_12, %c0_13] : memref<4x1xf32, #tpu.memory_space<vmem>>, vector<4x1xf32>
    %32 = arith.mulf %31, %28 : vector<4x1xf32>
    %33 = arith.mulf %30, %9 : vector<4x1xf32>
    %34 = arith.subf %32, %33 : vector<4x1xf32>
    %35 = vector.shape_cast %30 : vector<4x1xf32> to vector<1x4x1xf32>
    %36 = vector.broadcast %35 : vector<1x4x1xf32> to vector<2x4x256xf32>
    %37 = arith.mulf %0, %36 : vector<2x4x256xf32>
    %38 = vector.shape_cast %34 : vector<4x1xf32> to vector<1x4x1xf32>
    %39 = vector.broadcast %38 : vector<1x4x1xf32> to vector<2x4x256xf32>
    %40 = arith.addf %37, %39 : vector<2x4x256xf32>
    %41 = arith.negf %40 : vector<2x4x256xf32>
    %42 = math.exp %41 : vector<2x4x256xf32>
    %cst_14 = arith.constant 1.000000e+00 : f32
    %43 = vector.broadcast %cst_14 : f32 to vector<2x4x256xf32>
    %44 = arith.addf %43, %42 : vector<2x4x256xf32>
    %45 = arith.divf %43, %44 : vector<2x4x256xf32>
    %46 = arith.mulf %45, %0 : vector<2x4x256xf32>
    %c0_15 = arith.constant 0 : index
    %c0_16 = arith.constant 0 : index
    %c0_17 = arith.constant 0 : index
    %47 = vector.load %arg4[%c0_15, %c0_16, %c0_17] : memref<2x4x256xf32, #tpu.memory_space<vmem>>, vector<2x4x256xf32>
    tpu.vector_store %arg4[%c0_15, %c0_16, %c0_17], %46 {strides = array<i32>} : memref<2x4x256xf32, #tpu.memory_space<vmem>>, vector<2x4x256xf32>,
    return
  }
  func.func @transform_0(%arg0: i32) -> (i32, i32, i32) {
    %c0_i32 = arith.constant 0 : i32
    %c0_i32_0 = arith.constant 0 : i32
    %c0_i32_1 = arith.constant 0 : i32
    %c0_i32_2 = arith.constant 0 : i32
    return %c0_i32, %c0_i32_0, %c0_i32_1 : i32, i32, i32
  }
  func.func @transform_1(%arg0: i32) -> (i32, i32) {
    %c0_i32 = arith.constant 0 : i32
    %c0_i32_0 = arith.constant 0 : i32
    %c0_i32_1 = arith.constant 0 : i32
    return %c0_i32, %c0_i32_0 : i32, i32
  }
  func.func @transform_2(%arg0: i32) -> (i32, i32) {
    %c0_i32 = arith.constant 0 : i32
    %c0_i32_0 = arith.constant 0 : i32
    %c0_i32_1 = arith.constant 0 : i32
    return %c0_i32, %c0_i32_0 : i32, i32
  }
  func.func @transform_3(%arg0: i32) -> (i32, i32, i32) {
    %c0_i32 = arith.constant 0 : i32
    %c0_i32_0 = arith.constant 0 : i32
    %c0_i32_1 = arith.constant 0 : i32
    %c0_i32_2 = arith.constant 0 : i32
    return %c0_i32, %c0_i32_0, %c0_i32_1 : i32, i32, i32
  }
}

</mosaic_0001>

<llo_original>
// kernel: channel_att.1
$region0: #{channel_att.1}
  #allocation0 [shape = 'u32[]', space=smem, size = 0x4, offset = 0x4, fixed_abs, tag = 'smem constant byte address 0x4 - core index']
  #allocation1 [shape = 'u32[144,128]{1,0:T(1,128)}', space=vmem, size = 0x12000, scoped, tag = 'internal scratch']
  %s0 = inlined_call_operand.vmem [shape: f32[2,4,256], index: 0, kind: input, shape index: {}]
  %s1 = inlined_call_operand.vmem [shape: f32[4,1], index: 1, kind: input, shape index: {}]
  %s2 = inlined_call_operand.vmem [shape: f32[4,1], index: 2, kind: input, shape index: {}]
  %s3 = inlined_call_operand.vmem [shape: f32[2,4,256], index: 3, kind: output, shape index: {}]
  %s4 = sld [smem:[#allocation0]]
  $region22: #{channel_att.1} parent=0
    _
  %s6 = ssub.s32 1, %s4
  %s7 = scalar_select 0, %s6, %s4
  // Predicated region
  $region2: #{channel_att.1} parent=0 // pred_check
    _
  $region3: #{channel_att.1} parent=0 // pred_check_branch
    %9 = sbr.rel (0) target = $region5
  $region4: #{channel_att.1} parent=0 // pred_region
    _
  $region5: #{channel_att.1} parent=0 // pred_fallthru
    _
  // Predicated region
  $region6: #{channel_att.1} parent=0 // pred_check
    _
  $region7: #{channel_att.1} parent=0 // pred_check_branch
    %11 = sbr.rel (0) target = $region9
  $region8: #{channel_att.1} parent=0 // pred_region
    _
  $region9: #{channel_att.1} parent=0 // pred_fallthru
    _
  // Predicated region
  $region10: #{channel_att.1} parent=0 // pred_check
    _
  $region11: #{channel_att.1} parent=0 // pred_check_branch
    %13 = sbr.rel (0) target = $region13
  $region12: #{channel_att.1} parent=0 // pred_region
    _
  $region13: #{channel_att.1} parent=0 // pred_fallthru
    _
  %v14 = vld [vmem:[%s0] sm:$0xff]
  %v15 = vld [vmem:[%s0 + $0x8] sm:$0xff]
  %v18 = vcombine.high %v14, %v14
  %v19 = vcombine.high %v15, %v15
  %vm22 = vcmask 1043456
  %v23 = vsel %vm22, %v14, 0.0
  %v24 = vsel %vm22, %v18, 0.0
  %v25 = vadd.f32 %v23, %v24
  %26 = vadd.xlane.f32.xlu0 %v25
  %v27 = vpop.xlane.xlu0 %26
  %v28 = vsel %vm22, %v15, 0.0
  %v29 = vsel %vm22, %v19, 0.0
  %v30 = vadd.f32 %v28, %v29
  %31 = vadd.xlane.f32.xlu0 %v30
  %v32 = vpop.xlane.xlu0 %31
  %v33 = vsel %vm22, %v27, 0.0
  %v34 = vsel %vm22, %v32, 0.0
  %v35 = vadd.f32 %v33, %v34
  %v36 = vmul.f32 %v14, %v14
  %v37 = vmul.f32 %v15, %v15
  %v40 = vcombine.high %v36, %v36
  %v41 = vcombine.high %v37, %v37
  %v44 = vsel %vm22, %v36, 0.0
  %v45 = vsel %vm22, %v40, 0.0
  %v46 = vadd.f32 %v44, %v45
  %47 = vadd.xlane.f32.xlu0 %v46
  %v48 = vpop.xlane.xlu0 %47
  %v49 = vsel %vm22, %v37, 0.0
  %v50 = vsel %vm22, %v41, 0.0
  %v51 = vadd.f32 %v49, %v50
  %52 = vadd.xlane.f32.xlu0 %v51
  %v53 = vpop.xlane.xlu0 %52
  %v54 = vsel %vm22, %v48, 0.0
  %v55 = vsel %vm22, %v53, 0.0
  %v56 = vadd.f32 %v54, %v55
  %v57 = vmul.f32 %v35, 0.001953125
  %v58 = vmul.f32 %v56, 0.001953125
  %v59 = vmul.f32 %v57, %v57
  %v60 = vsub.f32 %v58, %v59
  %v61 = vmax.f32 %v60, 0.0
  %v62 = vadd.f32 %v61, 1e-05
  %v63 = vrsqrt.pop %v62
  %v64 = vld [vmem:[%s1] sm:$0xf]
  %v65 = vand.u32 2147483647, %v64
  %vm66 = vcmask 3072
  %v67 = vsel %vm66, %v65, 0.0
  %68 = vadd.xlane.f32.xlu0 %v67
  %v69 = vpop.xlane.xlu0 %68
  %v70 = vrot.slane %v69, 4
  %v71 = vadd.f32 %v69, %v70
  %v72 = vrot.slane %v71, 2
  %v73 = vadd.f32 %v71, %v72
  %v74 = vrot.slane %v73, 1
  %v75 = vadd.f32 %v73, %v74
  %s76 = vtos %v75
  %v77 = vstv %s76
  %v78 = vrcp.pop %v77
  %v79 = vmul.f32 %v65, %v78
  %v80 = vmul.f32 %v64, %v79
  %v81 = vmul.f32 %v80, %v63
  %v82 = vld [vmem:[%s2] sm:$0xf]
  %v83 = vmul.f32 %v82, %v79
  %v84 = vmul.f32 %v81, %v57
  %v85 = vsub.f32 %v83, %v84
  %87 = vset.pattern.permute.xlu0 0
  %88 = vperm.xlu0 %87, %v81
  %v89 = vpop.permute.xlu0 %88
  %v91 = vunpack.c.l.s4 839922192
  %v92 = vunpack.c.0.s8 %v91
  %v93 = vlaneseq
  %v94 = vshrl.u32 %v93, 7
  %v95 = vsub.s32 %v92, %v94
  %v96 = vrot.slane %v89, %v95
  %v98 = vmul.f32 %v14, %v96
  %v99 = vmul.f32 %v15, %v96
  %101 = vset.pattern.permute.xlu0 0
  %102 = vperm.xlu0 %101, %v85
  %v103 = vpop.permute.xlu0 %102
  %v105 = vunpack.c.l.s4 839922192
  %v106 = vunpack.c.0.s8 %v105
  %v107 = vlaneseq
  %v108 = vshrl.u32 %v107, 7
  %v109 = vsub.s32 %v106, %v108
  %v110 = vrot.slane %v103, %v109
  %v112 = vadd.f32 %v98, %v110
  %v113 = vadd.f32 %v99, %v110
  %v114 = vxor.u32 %v112, 2147483648
  %v115 = vxor.u32 %v113, 2147483648
  %v116 = vmul.f32 %v114, 1.442695
  %v117 = vpow.pop %v116
  %v118 = vmul.f32 %v115, 1.442695
  %v119 = vpow.pop %v118
  %v120 = vadd.f32 %v117, 1.0
  %v121 = vadd.f32 %v119, 1.0
  %v122 = vrcp.pop %v120
  %v123 = vmul.f32 1.0, %v122
  %v124 = vrcp.pop %v121
  %v125 = vmul.f32 1.0, %v124
  %v126 = vmul.f32 %v123, %v14
  %v127 = vmul.f32 %v125, %v15
  %128 = vst [vmem:[%s3] sm:$0xff] %v126
  %129 = vst [vmem:[%s3 + $0x8] sm:$0xff] %v127
  // Predicated region
  $region14: #{channel_att.1} parent=0 // pred_check
    _
  $region15: #{channel_att.1} parent=0 // pred_check_branch
    %131 = sbr.rel (0) target = $region17
  $region16: #{channel_att.1} parent=0 // pred_region
    _
  $region17: #{channel_att.1} parent=0 // pred_fallthru
    _
  // Predicated region
  $region18: #{channel_att.1} parent=0 // pred_check
    _
  $region19: #{channel_att.1} parent=0 // pred_check_branch
    %133 = sbr.rel (0) target = $region21
  $region20: #{channel_att.1} parent=0 // pred_region
    _
  $region21: #{channel_att.1} parent=0 // pred_fallthru
    _

</llo_original>
